<compile_context>
chip_gen: v5e
topology: v5e:2x2
jax: 0.10.0
libtpu: 0.0.40
codegen_flags: <defaults>
</compile_context>

<pallas_src>
import functools

import jax
import jax.numpy as jnp
from jax.experimental import pallas as pl
from jax.experimental.pallas import tpu as pltpu

_DILATIONS = (6, 12, 18)            # output_stride = 16 in the PyTorch module
_MAX_PAD = max(_DILATIONS)          # single global padding shared by all branches
_VMEM_LIMIT = 48 * 1024 * 1024      # fits v5e/v6e (128 MiB) and v7x (64 MiB) physical VMEM


def _round_up(x, m):
    return (x + m - 1) // m * m


def _channel_tile(c):
    """Tile of the channel (reduction) axis: a 128-multiple divisor of c when
    possible (real ASPP sizes), otherwise the full axis (block == full dim is
    always legal)."""
    if c % 128 == 0:
        for t in (512, 384, 256, 128):
            if c % t == 0:
                return t
    return c


# --------------------------- global average pool -----------------------------

def _gap_kernel(x_ref, o_ref, acc_ref, *, inv_hw):
    i = pl.program_id(0)

    @pl.when(i == 0)
    def _init():
        acc_ref[...] = jnp.zeros_like(acc_ref)

    acc_ref[...] += jnp.sum(x_ref[...].astype(jnp.float32), axis=1)

    @pl.when(i == pl.num_programs(0) - 1)
    def _finalize():
        o_ref[...] = acc_ref[...] * inv_hw


def global_avg_pool(x_nhwc):
    """AdaptiveAvgPool2d((1,1)): (N,H,W,C) -> (N,C), tiled reduction over H*W."""
    N, H, W, C = x_nhwc.shape
    hw = H * W
    t_hw = 128 if hw >= 128 else _round_up(hw, 8)
    hw_p = _round_up(hw, t_hw)
    xf = x_nhwc.reshape(N, hw, C)
    if hw_p != hw:
        xf = jnp.pad(xf, ((0, 0), (0, hw_p - hw), (0, 0)))   # zeros don't change the sum
    return pl.pallas_call(
        functools.partial(_gap_kernel, inv_hw=1.0 / hw),
        out_shape=jax.ShapeDtypeStruct((N, C), jnp.float32),
        grid=(hw_p // t_hw,),
        in_specs=[pl.BlockSpec((N, t_hw, C), lambda i: (0, i, 0))],
        out_specs=pl.BlockSpec((N, C), lambda i: (0, 0)),
        scratch_shapes=[pltpu.VMEM((N, C), jnp.float32)],
        compiler_params=pltpu.CompilerParams(
            dimension_semantics=("arbitrary",),
            vmem_limit_bytes=_VMEM_LIMIT),
        cost_estimate=pl.CostEstimate(
            flops=N * hw_p * C, transcendentals=0,
            bytes_accessed=N * hw_p * C * 4 + N * C * 4),
    )(xf)


# ----------------- 1x1 conv (+folded BN, ReLU) as a tiled matmul -------------

def _matmul_bias_relu_kernel(a_ref, w_ref, b_ref, o_ref):
    acc = jnp.dot(a_ref[...], w_ref[...], preferred_element_type=jnp.float32)
    o_ref[...] = jnp.maximum(acc + b_ref[...], 0.0)


def matmul_bias_relu(a, w, bias):
    """ReLU(a @ w + bias). a: (M,K) f32, w: (K,Cout) bf16, bias: (1,Cout) f32."""
    M, K = a.shape
    Cout = w.shape[1]
    tm = 128 if M >= 128 else _round_up(M, 8)
    Mp = _round_up(M, tm)
    if Mp != M:
        a = jnp.pad(a, ((0, Mp - M), (0, 0)))
    out = pl.pallas_call(
        _matmul_bias_relu_kernel,
        out_shape=jax.ShapeDtypeStruct((Mp, Cout), jnp.float32),
        grid=(Mp // tm,),
        in_specs=[
            pl.BlockSpec((tm, K), lambda i: (i, 0)),
            pl.BlockSpec((K, Cout), lambda i: (0, 0)),
            pl.BlockSpec((1, Cout), lambda i: (0, 0)),
        ],
        out_specs=pl.BlockSpec((tm, Cout), lambda i: (i, 0)),
        compiler_params=pltpu.CompilerParams(
            dimension_semantics=("parallel",),
            vmem_limit_bytes=_VMEM_LIMIT),
        cost_estimate=pl.CostEstimate(
            flops=2 * Mp * K * Cout, transcendentals=0,
            bytes_accessed=(Mp * K + K * Cout) * 2 + Mp * Cout * 4 + Cout * 4),
    )(a.astype(jnp.bfloat16), w, bias)
    return out[:M]


# --------- fused ASPP branches: c0 + 3 dilated 3x3 + pool broadcast ----------

def _aspp_branches_kernel(xp_ref, w1_ref, w3_ref, b_ref, pool_ref,
                          o_ref, acc_ref, *, dilations, pad):
    # xp_ref:   (1, H+2*pad, W+2*pad, tcin)  bf16, globally padded input
    # w1_ref:   (tcin, Cout)                 bf16, c0 weight (BN scale folded)
    # w3_ref:   (3, 9, tcin, Cout)           bf16, c1..c3 weights (BN folded)
    # b_ref:    (4, Cout)                    f32 biases for c0..c3
    # pool_ref: (1, 1, Cout)                 f32 image-pool branch output
    # o_ref:    (1, H, W, 5*Cout)            bf16, concat layout [pool,c0,c1,c2,c3]
    # acc_ref:  (4, H*W, Cout)               f32 accumulator over input-channel tiles
    ci = pl.program_id(1)
    H, W, c5 = o_ref.shape[1], o_ref.shape[2], o_ref.shape[3]
    cout = c5 // 5

    @pl.when(ci == 0)
    def _init():
        acc_ref[...] = jnp.zeros_like(acc_ref)

    x = xp_ref[0]                                          # (Hp, Wp, tcin)

    def tap(y0, x0):
        return x[y0:y0 + H, x0:x0 + W, :].reshape(H * W, x.shape[-1])

    # c0: 1x1 conv == centre tap of the globally padded input.
    acc_ref[0, :, :] = acc_ref[0, :, :] + jnp.dot(
        tap(pad, pad), w1_ref[...], preferred_element_type=jnp.float32)

    # c1..c3: 3x3 dilated convs, im2col done in-kernel as 9 shifted matmuls.
    for di, d in enumerate(dilations):
        base = pad - d                                     # per-branch padding == dilation
        part = jnp.zeros((H * W, cout), jnp.float32)
        for ky in range(3):
            for kx in range(3):
                part = part + jnp.dot(
                    tap(base + ky * d, base + kx * d),
                    w3_ref[di, ky * 3 + kx],
                    preferred_element_type=jnp.float32)
        acc_ref[di + 1, :, :] = acc_ref[di + 1, :, :] + part

    @pl.when(ci == pl.num_programs(1) - 1)
    def _finalize():
        b = b_ref[...]                                     # (4, Cout)
        # Bilinear upsample of a 1x1 map is exactly a constant broadcast
        # (only valid because the source is 1x1).
        pool_map = jnp.broadcast_to(pool_ref[0], (H * W, cout))
        outs = [pool_map]
        for j in range(4):
            outs.append(jnp.maximum(acc_ref[j, :, :] + b[j:j + 1, :], 0.0))
        cat = jnp.concatenate(outs, axis=-1)               # (H*W, 5*Cout)
        o_ref[...] = cat.astype(o_ref.dtype).reshape(1, H, W, c5)


def aspp_branches(xpad_bf16, w1, w3, biases, pool_out, H, W):
    N, Hp, Wp, Cin = xpad_bf16.shape
    Cout = w1.shape[1]
    tcin = _channel_tile(Cin)
    n_ci = Cin // tcin
    pool3 = pool_out.reshape(N, 1, Cout)
    flops = 2 * N * H * W * Cin * Cout * (1 + 9 * len(_DILATIONS))
    bytes_accessed = (N * Hp * Wp * Cin * 2 + (Cin * Cout + 27 * Cin * Cout) * 2
                      + N * H * W * 5 * Cout * 2)
    return pl.pallas_call(
        functools.partial(_aspp_branches_kernel, dilations=_DILATIONS, pad=_MAX_PAD),
        out_shape=jax.ShapeDtypeStruct((N, H, W, 5 * Cout), jnp.bfloat16),
        grid=(N, n_ci),
        in_specs=[
            pl.BlockSpec((1, Hp, Wp, tcin), lambda n, c: (n, 0, 0, c)),
            pl.BlockSpec((tcin, Cout), lambda n, c: (c, 0)),
            pl.BlockSpec((3, 9, tcin, Cout), lambda n, c: (0, 0, c, 0)),
            pl.BlockSpec((4, Cout), lambda n, c: (0, 0)),
            pl.BlockSpec((1, 1, Cout), lambda n, c: (n, 0, 0)),
        ],
        out_specs=pl.BlockSpec((1, H, W, 5 * Cout), lambda n, c: (n, 0, 0, 0)),
        scratch_shapes=[pltpu.VMEM((4, H * W, Cout), jnp.float32)],
        compiler_params=pltpu.CompilerParams(
            dimension_semantics=("parallel", "arbitrary"),
            vmem_limit_bytes=_VMEM_LIMIT),
        cost_estimate=pl.CostEstimate(flops=flops, transcendentals=0,
                                      bytes_accessed=bytes_accessed),
    )(xpad_bf16, w1, w3, biases, pool3)


# --------------------- 'fire' 3x3 conv (+folded BN, ReLU) --------------------

def _conv3x3_kernel(hp_ref, w_ref, b_ref, o_ref, acc_ref):
    # hp_ref: (1, H+2, W+2, tc) bf16 ; w_ref: (9, tc, Cout) bf16 ; b_ref: (1, Cout)
    ci = pl.program_id(1)
    H, W, Cout = o_ref.shape[1], o_ref.shape[2], o_ref.shape[3]

    @pl.when(ci == 0)
    def _init():
        acc_ref[...] = jnp.zeros_like(acc_ref)

    x = hp_ref[0]
    part = jnp.zeros((H * W, Cout), jnp.float32)
    for ky in range(3):
        for kx in range(3):
            t = x[ky:ky + H, kx:kx + W, :].reshape(H * W, x.shape[-1])
            part = part + jnp.dot(t, w_ref[ky * 3 + kx],
                                  preferred_element_type=jnp.float32)
    acc_ref[...] += part

    @pl.when(ci == pl.num_programs(1) - 1)
    def _finalize():
        o_ref[...] = jnp.maximum(acc_ref[...] + b_ref[...], 0.0).reshape(1, H, W, Cout)


def conv3x3_bias_relu(h_bf16, w9, bias):
    """3x3 conv (stride 1, pad 1, dil 1) + folded-BN bias + ReLU. NHWC in/out."""
    N, H, W, C = h_bf16.shape
    Cout = w9.shape[2]
    hp = jnp.pad(h_bf16, ((0, 0), (1, 1), (1, 1), (0, 0)))
    tc = _channel_tile(C)
    n_ci = C // tc
    flops = 2 * N * H * W * C * Cout * 9
    bytes_accessed = N * (H + 2) * (W + 2) * C * 2 + 9 * C * Cout * 2 + N * H * W * Cout * 4
    return pl.pallas_call(
        _conv3x3_kernel,
        out_shape=jax.ShapeDtypeStruct((N, H, W, Cout), jnp.float32),
        grid=(N, n_ci),
        in_specs=[
            pl.BlockSpec((1, H + 2, W + 2, tc), lambda n, c: (n, 0, 0, c)),
            pl.BlockSpec((9, tc, Cout), lambda n, c: (0, c, 0)),
            pl.BlockSpec((1, Cout), lambda n, c: (0, 0)),
        ],
        out_specs=pl.BlockSpec((1, H, W, Cout), lambda n, c: (n, 0, 0, 0)),
        scratch_shapes=[pltpu.VMEM((H * W, Cout), jnp.float32)],
        compiler_params=pltpu.CompilerParams(
            dimension_semantics=("parallel", "arbitrary"),
            vmem_limit_bytes=_VMEM_LIMIT),
        cost_estimate=pl.CostEstimate(flops=flops, transcendentals=0,
                                      bytes_accessed=bytes_accessed),
    )(hp, w9, bias)


# ------------------------------ parameter prep -------------------------------

def _fold_bn(gamma, beta, mean, var, eps=1e-5):
    scale = gamma / jnp.sqrt(var + eps)
    bias = beta - mean * scale
    return scale, bias


def _prep_1x1(p):
    """OIHW (Cout,Cin,1,1) -> (Cin,Cout) bf16 with BN scale folded; f32 bias."""
    scale, bias = _fold_bn(p['gamma'], p['beta'], p['mean'], p['var'])
    w = p['w'][:, :, 0, 0].T * scale[None, :]
    return w.astype(jnp.bfloat16), bias.reshape(1, -1).astype(jnp.float32)


def _prep_3x3(p):
    """OIHW (Cout,Cin,3,3) -> (9,Cin,Cout) bf16 ordered (kh,kw) with BN folded."""
    scale, bias = _fold_bn(p['gamma'], p['beta'], p['mean'], p['var'])
    cout, cin = p['w'].shape[:2]
    w = jnp.transpose(p['w'], (2, 3, 1, 0)).reshape(9, cin, cout) * scale[None, None, :]
    return w.astype(jnp.bfloat16), bias.reshape(1, -1).astype(jnp.float32)


def init_cbr(key, cin, cout, k):
    kw, kg, kb, km, kv = jax.random.split(key, 5)
    return dict(
        w=jax.random.normal(kw, (cout, cin, k, k), jnp.float32) * 0.1,   # OIHW
        gamma=jax.random.uniform(kg, (cout,), jnp.float32, 0.5, 1.5),
        beta=jax.random.normal(kb, (cout,), jnp.float32) * 0.1,
        mean=jax.random.normal(km, (cout,), jnp.float32) * 0.1,
        var=jax.random.uniform(kv, (cout,), jnp.float32, 0.5, 1.5),
    )


def init_aspp_params(key, in_channels, out_channels):
    ks = jax.random.split(key, 6)
    return {
        'c0':   init_cbr(ks[0], in_channels, out_channels, 1),
        'c1':   init_cbr(ks[1], in_channels, out_channels, 3),
        'c2':   init_cbr(ks[2], in_channels, out_channels, 3),
        'c3':   init_cbr(ks[3], in_channels, out_channels, 3),
        'pool': init_cbr(ks[4], in_channels, out_channels, 1),
        'fire': init_cbr(ks[5], out_channels * 5, out_channels, 3),
    }


# --------------------------------- forward -----------------------------------

def aspp_forward(x_nchw, params):
    N, Cin, H, W = x_nchw.shape
    Cout = params['c0']['w'].shape[0]
    x = jnp.transpose(x_nchw, (0, 2, 3, 1)).astype(jnp.float32)        # NHWC

    # imagepool branch: tiled GAP -> 1x1 conv + folded BN + ReLU
    pooled = global_avg_pool(x)                                        # (N, Cin)
    wp, bp = _prep_1x1(params['pool'])
    pool_out = matmul_bias_relu(pooled, wp, bp)                        # (N, Cout)

    # fused c0 + dilated c1..c3 + pool broadcast, written in concat layout
    w1, b1 = _prep_1x1(params['c0'])
    w3s, b3s = [], []
    for name in ('c1', 'c2', 'c3'):
        w, b = _prep_3x3(params[name])
        w3s.append(w)
        b3s.append(b)
    w3 = jnp.stack(w3s, axis=0)                                        # (3, 9, Cin, Cout)
    biases = jnp.concatenate([b1] + b3s, axis=0)                       # (4, Cout)

    xpad = jnp.pad(x.astype(jnp.bfloat16),
                   ((0, 0), (_MAX_PAD, _MAX_PAD), (_MAX_PAD, _MAX_PAD), (0, 0)))
    h = aspp_branches(xpad, w1, w3, biases, pool_out, H, W)            # (N,H,W,5*Cout) bf16

    # fire: 3x3 conv + BN + ReLU (Dropout2d = identity in eval mode)
    wf, bfire = _prep_3x3(params['fire'])
    out = conv3x3_bias_relu(h, wf, bfire)                              # (N,H,W,Cout) f32

    return jnp.transpose(out, (0, 3, 1, 2))                            # back to NCHW


# ----------------------------------- main -------------------------------------

if __name__ == "__main__":
    key = jax.random.PRNGKey(0)
    k_x, k_p = jax.random.split(key)

    N, Cin, H, W = 2, 4, 16, 16
    Cout = 8
    x = jax.random.normal(k_x, (N, Cin, H, W), jnp.float32)
    params = init_aspp_params(k_p, Cin, Cout)

    y = aspp_forward(x, params)
    y = jax.block_until_ready(y)
    assert y.shape == (N, Cout, H, W), y.shape
    assert jnp.all(jnp.isfinite(y))
    print("KERNEL_OK")
</pallas_src>

<mosaic_0001>
module attributes {stable_mosaic.version = 11 : i64} {
  func.func @_gap_kernel(%arg0: i32, %arg1: memref<2x128x4xf32, #tpu.memory_space<vmem>>, %arg2: memref<2x4xf32, #tpu.memory_space<vmem>>, %arg3: memref<2x4xf32, #tpu.memory_space<vmem>>) attributes {dimension_semantics = [#tpu.dimension_semantics<arbitrary>], iteration_bounds = array<i64: 2>, scalar_prefetch = 0 : i64, scratch_operands = 1 : i64, tpu.core_type = #tpu.core_type<tc>, window_params = [{transform_indices = @transform_0, window_bounds = array<i64: 2, 128, 4>}, {pipeline_mode = #tpu.pipeline_mode<synchronous>, transform_indices = @transform_1, window_bounds = array<i64: 2, 4>}]} {
    %c0_i32 = arith.constant 0 : i32
    %0 = arith.cmpi eq, %arg0, %c0_i32 : i32
    %1 = arith.extui %0 : i1 to i32
    %c0_i32_0 = arith.constant 0 : i32
    %2 = arith.cmpi ne, %1, %c0_i32_0 : i32
    scf.if %2 {
      %cst_8 = arith.constant 0.000000e+00 : f32
      %11 = vector.broadcast %cst_8 : f32 to vector<2x4xf32>
      %c0_9 = arith.constant 0 : index
      %c0_10 = arith.constant 0 : index
      %12 = vector.load %arg3[%c0_9, %c0_10] : memref<2x4xf32, #tpu.memory_space<vmem>>, vector<2x4xf32>
      tpu.vector_store %arg3[%c0_9, %c0_10], %11 {strides = array<i32>} : memref<2x4xf32, #tpu.memory_space<vmem>>, vector<2x4xf32>,
    } else {
    }
    %c0 = arith.constant 0 : index
    %c0_1 = arith.constant 0 : index
    %3 = vector.load %arg3[%c0, %c0_1] : memref<2x4xf32, #tpu.memory_space<vmem>>, vector<2x4xf32>
    %c0_2 = arith.constant 0 : index
    %c0_3 = arith.constant 0 : index
    %c0_4 = arith.constant 0 : index
    %4 = vector.load %arg1[%c0_2, %c0_3, %c0_4] : memref<2x128x4xf32, #tpu.memory_space<vmem>>, vector<2x128x4xf32>
    %cst = arith.constant dense<0.000000e+00> : vector<2x4xf32>
    %5 = vector.multi_reduction <add>, %4, %cst [1] : vector<2x128x4xf32> to vector<2x4xf32>
    %6 = arith.addf %3, %5 : vector<2x4xf32>
    %c0_5 = arith.constant 0 : index
    %c0_6 = arith.constant 0 : index
    %7 = vector.load %arg3[%c0_5, %c0_6] : memref<2x4xf32, #tpu.memory_space<vmem>>, vector<2x4xf32>
    tpu.vector_store %arg3[%c0_5, %c0_6], %6 {strides = array<i32>} : memref<2x4xf32, #tpu.memory_space<vmem>>, vector<2x4xf32>,
    %c1_i32 = arith.constant 1 : i32
    %8 = arith.cmpi eq, %arg0, %c1_i32 : i32
    %9 = arith.extui %8 : i1 to i32
    %c0_i32_7 = arith.constant 0 : i32
    %10 = arith.cmpi ne, %9, %c0_i32_7 : i32
    scf.if %10 {
      %c0_8 = arith.constant 0 : index
      %c0_9 = arith.constant 0 : index
      %11 = vector.load %arg3[%c0_8, %c0_9] : memref<2x4xf32, #tpu.memory_space<vmem>>, vector<2x4xf32>
      %cst_10 = arith.constant 3.906250e-03 : f32
      %12 = vector.broadcast %cst_10 : f32 to vector<2x4xf32>
      %13 = arith.mulf %11, %12 : vector<2x4xf32>
      %c0_11 = arith.constant 0 : index
      %c0_12 = arith.constant 0 : index
      %14 = vector.load %arg2[%c0_11, %c0_12] : memref<2x4xf32, #tpu.memory_space<vmem>>, vector<2x4xf32>
      tpu.vector_store %arg2[%c0_11, %c0_12], %13 {strides = array<i32>} : memref<2x4xf32, #tpu.memory_space<vmem>>, vector<2x4xf32>,
    } else {
    }
    return
  }
  func.func @transform_0(%arg0: i32) -> (i32, i32, i32) {
    %c0_i32 = arith.constant 0 : i32
    %c0_i32_0 = arith.constant 0 : i32
    %c0_i32_1 = arith.constant 0 : i32
    return %c0_i32, %arg0, %c0_i32_0 : i32, i32, i32
  }
  func.func @transform_1(%arg0: i32) -> (i32, i32) {
    %c0_i32 = arith.constant 0 : i32
    %c0_i32_0 = arith.constant 0 : i32
    %c0_i32_1 = arith.constant 0 : i32
    return %c0_i32, %c0_i32_0 : i32, i32
  }
}

</mosaic_0001>

<llo_original>
// kernel: tpu_custom_call.1
$region0: #{tpu_custom_call.1}
  #allocation0 [shape = 'u32[]', space=smem, size = 0x4, offset = 0x4, fixed_abs, tag = 'smem constant byte address 0x4 - core index']
  #allocation1 [shape = 'u32[72,128]{1,0:T(1,128)}', space=vmem, size = 0x9000, scoped, tag = 'internal scratch']
  #allocation2 [shape = 'f32[2,4]{1,0:T(2,128)}', space=vmem, size = 0x400, scoped, tag = 'scratch operand']
  %s0 = inlined_call_operand.vmem [shape: f32[2,256,4], index: 0, kind: input, shape index: {}]
  %s1 = inlined_call_operand.hbm [shape: f32[2,4], index: 1, kind: output, shape index: {}]
  %s2 = sld [smem:[#allocation0]]
  $region83: #{tpu_custom_call.1} parent=0
    _
  %s4 = ssub.s32 1, %s2
  %s5 = scalar_select 0, %s4, %s2
  $region1: #{tpu_custom_call.1} parent=0
    #allocation3 [shape = 'u8[262144]{0}', space=vmem, size = 0x40000, scoped, tag = 'input window, operand 0']
    #allocation4 [shape = 'u8[1024]{0}', space=vmem, size = 0x400, scoped, tag = 'output window, operand 0, single buffered']
    #allocation5 [shape = 's32[2]{0}', space=sflag, size = 0x8, scoped, tag = 'scoped memory for tpu_custom_call.1']
    %6 = vsyncpa [#allocation5], 0
    loop: start=0, step=1, limit=4
    $region2: #{tpu_custom_call.1} parent=1 // loop_pre_header
      _
    $region3: #{tpu_custom_call.1} parent=1 // loop_header
      %s8 = sphi 0, %s12
      %p9 = scmp.ge.s32.totalorder %s8, 4
      %s18 = sphi 0, %s20
      %s21 = sphi 0, %s18
      %s22 = sphi 0, %s21
      %s38 = sphi 0, %s22
      %s42 = sphi 0, %s42
      %s44 = sphi 0, %s42
      %s45 = sphi 0, %s44
      %s59 = sphi 0, %s45
    $region4: #{tpu_custom_call.1} parent=1 // loop_header_branch
      %11 = sbr.rel (%p9) target = $region8
    $region5: #{tpu_custom_call.1} parent=1 // loop_body
      %s13 = ssub.s32 %s8, 1
      %s14 = ssub.s32 %s8, 2
      %s15 = sadd.s32 %s8, 1
      %s16 = ssub.s32 %s8, %s15
      %p17 = scmp.eq.s32.totalorder %s16, 0
      %s19 = sadd.s32 %s18, 1
      %s20 = scalar_select %p17, %s18, %s19
      %p23 = pneg %p17
      %p24 = scmp.eq.s32.totalorder %s8, 1
      %p25 = por %p23, %p24
      %p26 = scmp.ne.s32.totalorder %s18, %s21
      %p27 = scmp.eq.s32.totalorder %s8, 0
      %p28 = por %p26, %p27
      %p29 = scmp.ne.s32.totalorder %s18, %s21
      %p30 = scmp.eq.s32.totalorder %s13, 1
      %p31 = por %p29, %p30
      %p32 = scmp.ne.s32.totalorder %s21, %s22
      %p33 = scmp.eq.s32.totalorder %s13, 0
      %p34 = por %p32, %p33
      %p35 = scmp.ne.s32.totalorder %s21, %s22
      %p36 = scmp.eq.s32.totalorder %s14, 1
      %p37 = por %p35, %p36
      %p39 = scmp.ne.s32.totalorder %s22, %s38
      %p40 = scmp.eq.s32.totalorder %s14, 0
      %p41 = por %p39, %p40
      %s43 = sadd.s32 %s42, 1
      %p46 = scmp.eq.s32.totalorder %s8, 1
      %p47 = scmp.ne.s32.totalorder %s42, %s44
      %p48 = scmp.eq.s32.totalorder %s8, 0
      %p49 = por %p47, %p48
      %p50 = scmp.ne.s32.totalorder %s42, %s44
      %p51 = scmp.eq.s32.totalorder %s13, 1
      %p52 = por %p50, %p51
      %p53 = scmp.ne.s32.totalorder %s44, %s45
      %p54 = scmp.eq.s32.totalorder %s13, 0
      %p55 = por %p53, %p54
      %p56 = scmp.ne.s32.totalorder %s44, %s45
      %p57 = scmp.eq.s32.totalorder %s14, 1
      %p58 = por %p56, %p57
      %p60 = scmp.ne.s32.totalorder %s45, %s59
      %p61 = scmp.eq.s32.totalorder %s14, 0
      %p62 = por %p60, %p61
      %p63 = scmp.le.s32.totalorder 1, %s8
      %p64 = scmp.lt.s32.totalorder %s8, 3
      %p65 = pnand %p63, %p64
      %p66 = pneg %p65
      // Predicated region
      $region9: #{tpu_custom_call.1} parent=5 // pred_check
        _
      $region10: #{tpu_custom_call.1} parent=5 // pred_check_branch
        %68 = sbr.rel (%p65) target = $region12
      $region11: #{tpu_custom_call.1} parent=5 // pred_region
        %s69 = ssub.s32 %s8, 1
      $region12: #{tpu_custom_call.1} parent=5 // pred_fallthru
        _
      %p70 = scmp.lt.s32.totalorder %s8, 2
      // Predicated region
      $region13: #{tpu_custom_call.1} parent=5 // pred_check
        %p71 = pneg %p70
      $region14: #{tpu_custom_call.1} parent=5 // pred_check_branch
        %73 = sbr.rel (%p71) target = $region16
      $region15: #{tpu_custom_call.1} parent=5 // pred_region
        // Predicated region
        $region17: #{tpu_custom_call.1} parent=15 // pred_check
          %p74 = pneg %p28
        $region18: #{tpu_custom_call.1} parent=15 // pred_check_branch
          %76 = sbr.rel (%p74) target = $region20
        $region19: #{tpu_custom_call.1} parent=15 // pred_region
          %s77 = sand.u32 %s18, 1
          %s78 = sand.u32 %s18, 1
          %s79 = smul.addr %s78, 256
          %s80 = scalar_lea.vmem [#allocation3], %s79
          %s81 = smul.u32 16, %s8
          %s82 = smul.addr %s81, 8
          %s83 = scalar_lea.vmem %s0, %s82
          // Predicated region
          $region21: #{tpu_custom_call.1} parent=19 // pred_check
            _
          $region22: #{tpu_custom_call.1} parent=19 // pred_check_branch
            %85 = sbr.rel (0) target = $region24
          $region23: #{tpu_custom_call.1} parent=19 // pred_region
            // Predicated region
            $region25: #{tpu_custom_call.1} parent=23 // pred_check
              _
            $region26: #{tpu_custom_call.1} parent=23 // pred_check_branch
              %87 = sbr.rel (0) target = $region28
            $region27: #{tpu_custom_call.1} parent=23 // pred_region
              // Predicated region
              $region40: #{tpu_custom_call.1} parent=27 // pred_check
                _
              $region41: #{tpu_custom_call.1} parent=27 // pred_check_branch
                %165 = sbr.rel (0) target = $region43
              $region42: #{tpu_custom_call.1} parent=27 // pred_region
                loop: start=0, step=1, limit=1
                $region44: #{tpu_custom_call.1} parent=42 // loop_pre_header
                  _
                $region45: #{tpu_custom_call.1} parent=42 // loop_header
                  %s167 = sphi 0, %s171
                  %p168 = scmp.ge.s32.totalorder %s167, 1
                  %s172 = sphi %s83, %s83
                  %s173 = sphi %s80, %s80
                $region46: #{tpu_custom_call.1} parent=42 // loop_header_branch
                  %170 = sbr.rel (%p168) target = $region50
                $region47: #{tpu_custom_call.1} parent=42 // loop_body
                  %v174 = vld [vmem:[%s172] sm:$0xff]
                  %175 = vst [vmem:[%s173] sm:$0xff] %v174
                  %v176 = vld [vmem:[%s172 + $0x8] sm:$0xff]
                  %177 = vst [vmem:[%s173 + $0x8] sm:$0xff] %v176
                  %v178 = vld [vmem:[%s172 + $0x10] sm:$0xff]
                  %179 = vst [vmem:[%s173 + $0x10] sm:$0xff] %v178
                  %v180 = vld [vmem:[%s172 + $0x18] sm:$0xff]
                  %181 = vst [vmem:[%s173 + $0x18] sm:$0xff] %v180
                  %v182 = vld [vmem:[%s172 + $0x20] sm:$0xff]
                  %183 = vst [vmem:[%s173 + $0x20] sm:$0xff] %v182
                  %v184 = vld [vmem:[%s172 + $0x28] sm:$0xff]
                  %185 = vst [vmem:[%s173 + $0x28] sm:$0xff] %v184
                  %v186 = vld [vmem:[%s172 + $0x30] sm:$0xff]
                  %187 = vst [vmem:[%s173 + $0x30] sm:$0xff] %v186
                  %v188 = vld [vmem:[%s172 + $0x38] sm:$0xff]
                  %189 = vst [vmem:[%s173 + $0x38] sm:$0xff] %v188
                  %v190 = vld [vmem:[%s172 + $0x40] sm:$0xff]
                  %191 = vst [vmem:[%s173 + $0x40] sm:$0xff] %v190
                  %v192 = vld [vmem:[%s172 + $0x48] sm:$0xff]
                  %193 = vst [vmem:[%s173 + $0x48] sm:$0xff] %v192
                  %v194 = vld [vmem:[%s172 + $0x50] sm:$0xff]
                  %195 = vst [vmem:[%s173 + $0x50] sm:$0xff] %v194
                  %v196 = vld [vmem:[%s172 + $0x58] sm:$0xff]
                  %197 = vst [vmem:[%s173 + $0x58] sm:$0xff] %v196
                  %v198 = vld [vmem:[%s172 + $0x60] sm:$0xff]
                  %199 = vst [vmem:[%s173 + $0x60] sm:$0xff] %v198
                  %v200 = vld [vmem:[%s172 + $0x68] sm:$0xff]
                  %201 = vst [vmem:[%s173 + $0x68] sm:$0xff] %v200
                  %v202 = vld [vmem:[%s172 + $0x70] sm:$0xff]
                  %203 = vst [vmem:[%s173 + $0x70] sm:$0xff] %v202
                  %v204 = vld [vmem:[%s172 + $0x78] sm:$0xff]
                  %205 = vst [vmem:[%s173 + $0x78] sm:$0xff] %v204
                  %v206 = vld [vmem:[%s172 + $0x100] sm:$0xff]
                  %207 = vst [vmem:[%s173 + $0x80] sm:$0xff] %v206
                  %v208 = vld [vmem:[%s172 + $0x108] sm:$0xff]
                  %209 = vst [vmem:[%s173 + $0x88] sm:$0xff] %v208
                  %v210 = vld [vmem:[%s172 + $0x110] sm:$0xff]
                  %211 = vst [vmem:[%s173 + $0x90] sm:$0xff] %v210
                  %v212 = vld [vmem:[%s172 + $0x118] sm:$0xff]
                  %213 = vst [vmem:[%s173 + $0x98] sm:$0xff] %v212
                  %v214 = vld [vmem:[%s172 + $0x120] sm:$0xff]
                  %215 = vst [vmem:[%s173 + $0xa0] sm:$0xff] %v214
                  %v216 = vld [vmem:[%s172 + $0x128] sm:$0xff]
                  %217 = vst [vmem:[%s173 + $0xa8] sm:$0xff] %v216
                  %v218 = vld [vmem:[%s172 + $0x130] sm:$0xff]
                  %219 = vst [vmem:[%s173 + $0xb0] sm:$0xff] %v218
                  %v220 = vld [vmem:[%s172 + $0x138] sm:$0xff]
                  %221 = vst [vmem:[%s173 + $0xb8] sm:$0xff] %v220
                  %v222 = vld [vmem:[%s172 + $0x140] sm:$0xff]
                  %223 = vst [vmem:[%s173 + $0xc0] sm:$0xff] %v222
                  %v224 = vld [vmem:[%s172 + $0x148] sm:$0xff]
                  %225 = vst [vmem:[%s173 + $0xc8] sm:$0xff] %v224
                  %v226 = vld [vmem:[%s172 + $0x150] sm:$0xff]
                  %227 = vst [vmem:[%s173 + $0xd0] sm:$0xff] %v226
                  %v228 = vld [vmem:[%s172 + $0x158] sm:$0xff]
                  %229 = vst [vmem:[%s173 + $0xd8] sm:$0xff] %v228
                  %v230 = vld [vmem:[%s172 + $0x160] sm:$0xff]
                  %231 = vst [vmem:[%s173 + $0xe0] sm:$0xff] %v230
                  %v232 = vld [vmem:[%s172 + $0x168] sm:$0xff]
                  %233 = vst [vmem:[%s173 + $0xe8] sm:$0xff] %v232
                  %v234 = vld [vmem:[%s172 + $0x170] sm:$0xff]
                  %235 = vst [vmem:[%s173 + $0xf0] sm:$0xff] %v234
                  %v236 = vld [vmem:[%s172 + $0x178] sm:$0xff]
                  %237 = vst [vmem:[%s173 + $0xf8] sm:$0xff] %v236
                $region48: #{tpu_custom_call.1} parent=42 // loop_footer
                  %s171 = sadd.s32 1, %s167
                $region49: #{tpu_custom_call.1} parent=42 // loop_footer_branch
                  %166 = sbr.rel target = $region45
                $region50: #{tpu_custom_call.1} parent=42 // loop_exit
                  _
              $region43: #{tpu_custom_call.1} parent=27 // pred_fallthru
                _
              // Predicated region
              $region51: #{tpu_custom_call.1} parent=27 // pred_check
                _
              $region52: #{tpu_custom_call.1} parent=27 // pred_check_branch
                %239 = sbr.rel target = $region54
              $region53: #{tpu_custom_call.1} parent=27 // pred_region
                _
              $region54: #{tpu_custom_call.1} parent=27 // pred_fallthru
                _
            $region28: #{tpu_custom_call.1} parent=23 // pred_fallthru
              _
            // Predicated region
            $region29: #{tpu_custom_call.1} parent=23 // pred_check
              _
            $region30: #{tpu_custom_call.1} parent=23 // pred_check_branch
              %89 = sbr.rel target = $region32
            $region31: #{tpu_custom_call.1} parent=23 // pred_region
              %s91 = ssub.s32 256, 1
              loop: start=0, step=1, limit=1
              $region33: #{tpu_custom_call.1} parent=31 // loop_pre_header
                _
              $region34: #{tpu_custom_call.1} parent=31 // loop_header
                %s93 = sphi 0, %s97
                %p94 = scmp.ge.s32.totalorder %s93, 1
                %s98 = sphi %s83, %s83
                %s99 = sphi %s80, %s80
              $region35: #{tpu_custom_call.1} parent=31 // loop_header_branch
                %96 = sbr.rel (%p94) target = $region39
              $region36: #{tpu_custom_call.1} parent=31 // loop_body
                %v100 = vld [vmem:[%s98] sm:%s91]
                %101 = vst [vmem:[%s99] sm:%s91] %v100
                %v102 = vld [vmem:[%s98 + $0x8] sm:%s91]
                %103 = vst [vmem:[%s99 + $0x8] sm:%s91] %v102
                %v104 = vld [vmem:[%s98 + $0x10] sm:%s91]
                %105 = vst [vmem:[%s99 + $0x10] sm:%s91] %v104
                %v106 = vld [vmem:[%s98 + $0x18] sm:%s91]
                %107 = vst [vmem:[%s99 + $0x18] sm:%s91] %v106
                %v108 = vld [vmem:[%s98 + $0x20] sm:%s91]
                %109 = vst [vmem:[%s99 + $0x20] sm:%s91] %v108
                %v110 = vld [vmem:[%s98 + $0x28] sm:%s91]
                %111 = vst [vmem:[%s99 + $0x28] sm:%s91] %v110
                %v112 = vld [vmem:[%s98 + $0x30] sm:%s91]
                %113 = vst [vmem:[%s99 + $0x30] sm:%s91] %v112
                %v114 = vld [vmem:[%s98 + $0x38] sm:%s91]
                %115 = vst [vmem:[%s99 + $0x38] sm:%s91] %v114
                %v116 = vld [vmem:[%s98 + $0x40] sm:%s91]
                %117 = vst [vmem:[%s99 + $0x40] sm:%s91] %v116
                %v118 = vld [vmem:[%s98 + $0x48] sm:%s91]
                %119 = vst [vmem:[%s99 + $0x48] sm:%s91] %v118
                %v120 = vld [vmem:[%s98 + $0x50] sm:%s91]
                %121 = vst [vmem:[%s99 + $0x50] sm:%s91] %v120
                %v122 = vld [vmem:[%s98 + $0x58] sm:%s91]
                %123 = vst [vmem:[%s99 + $0x58] sm:%s91] %v122
                %v124 = vld [vmem:[%s98 + $0x60] sm:%s91]
                %125 = vst [vmem:[%s99 + $0x60] sm:%s91] %v124
                %v126 = vld [vmem:[%s98 + $0x68] sm:%s91]
                %127 = vst [vmem:[%s99 + $0x68] sm:%s91] %v126
                %v128 = vld [vmem:[%s98 + $0x70] sm:%s91]
                %129 = vst [vmem:[%s99 + $0x70] sm:%s91] %v128
                %v130 = vld [vmem:[%s98 + $0x78] sm:%s91]
                %131 = vst [vmem:[%s99 + $0x78] sm:%s91] %v130
                %v132 = vld [vmem:[%s98 + $0x100] sm:%s91]
                %133 = vst [vmem:[%s99 + $0x80] sm:%s91] %v132
                %v134 = vld [vmem:[%s98 + $0x108] sm:%s91]
                %135 = vst [vmem:[%s99 + $0x88] sm:%s91] %v134
                %v136 = vld [vmem:[%s98 + $0x110] sm:%s91]
                %137 = vst [vmem:[%s99 + $0x90] sm:%s91] %v136
                %v138 = vld [vmem:[%s98 + $0x118] sm:%s91]
                %139 = vst [vmem:[%s99 + $0x98] sm:%s91] %v138
                %v140 = vld [vmem:[%s98 + $0x120] sm:%s91]
                %141 = vst [vmem:[%s99 + $0xa0] sm:%s91] %v140
                %v142 = vld [vmem:[%s98 + $0x128] sm:%s91]
                %143 = vst [vmem:[%s99 + $0xa8] sm:%s91] %v142
                %v144 = vld [vmem:[%s98 + $0x130] sm:%s91]
                %145 = vst [vmem:[%s99 + $0xb0] sm:%s91] %v144
                %v146 = vld [vmem:[%s98 + $0x138] sm:%s91]
                %147 = vst [vmem:[%s99 + $0xb8] sm:%s91] %v146
                %v148 = vld [vmem:[%s98 + $0x140] sm:%s91]
                %149 = vst [vmem:[%s99 + $0xc0] sm:%s91] %v148
                %v150 = vld [vmem:[%s98 + $0x148] sm:%s91]
                %151 = vst [vmem:[%s99 + $0xc8] sm:%s91] %v150
                %v152 = vld [vmem:[%s98 + $0x150] sm:%s91]
                %153 = vst [vmem:[%s99 + $0xd0] sm:%s91] %v152
                %v154 = vld [vmem:[%s98 + $0x158] sm:%s91]
                %155 = vst [vmem:[%s99 + $0xd8] sm:%s91] %v154
                %v156 = vld [vmem:[%s98 + $0x160] sm:%s91]
                %157 = vst [vmem:[%s99 + $0xe0] sm:%s91] %v156
                %v158 = vld [vmem:[%s98 + $0x168] sm:%s91]
                %159 = vst [vmem:[%s99 + $0xe8] sm:%s91] %v158
                %v160 = vld [vmem:[%s98 + $0x170] sm:%s91]
                %161 = vst [vmem:[%s99 + $0xf0] sm:%s91] %v160
                %v162 = vld [vmem:[%s98 + $0x178] sm:%s91]
                %163 = vst [vmem:[%s99 + $0xf8] sm:%s91] %v162
              $region37: #{tpu_custom_call.1} parent=31 // loop_footer
                %s97 = sadd.s32 1, %s93
              $region38: #{tpu_custom_call.1} parent=31 // loop_footer_branch
                %92 = sbr.rel target = $region34
              $region39: #{tpu_custom_call.1} parent=31 // loop_exit
                _
            $region32: #{tpu_custom_call.1} parent=23 // pred_fallthru
              _
          $region24: #{tpu_custom_call.1} parent=19 // pred_fallthru
            _
          %240 = vnop
        $region20: #{tpu_custom_call.1} parent=15 // pred_fallthru
          _
      $region16: #{tpu_custom_call.1} parent=5 // pred_fallthru
        _
      %p241 = scmp.le.s32.totalorder 1, %s8
      %p242 = scmp.lt.s32.totalorder %s8, 3
      %p243 = pnand %p241, %p242
      %p244 = pneg %p243
      // Predicated region
      $region55: #{tpu_custom_call.1} parent=5 // pred_check
        _
      $region56: #{tpu_custom_call.1} parent=5 // pred_check_branch
        %246 = sbr.rel (%p243) target = $region58
      $region57: #{tpu_custom_call.1} parent=5 // pred_region
        %s247 = ssub.s32 %s8, 1
        %s248 = sand.u32 %s21, 1
        %s249 = sand.u32 %s21, 1
        %s250 = smul.addr %s249, 256
        %s251 = scalar_lea.vmem [#allocation3], %s250
        // Predicated region
        $region59: #{tpu_custom_call.1} parent=57 // pred_check
          %p252 = pneg %p34
        $region60: #{tpu_custom_call.1} parent=57 // pred_check_branch
          %254 = sbr.rel (%p252) target = $region62
        $region61: #{tpu_custom_call.1} parent=57 // pred_region
          _
        $region62: #{tpu_custom_call.1} parent=57 // pred_fallthru
          _
        %s255 = sand.u32 %s21, 1
        %s256 = sand.u32 %s21, 1
        %s257 = smul.addr %s256, 256
        %s258 = scalar_lea.vmem [#allocation3], %s257
        %p259 = pneg %p34
        %p260 = pneg %p31
        %p261 = pneg %p55
        %p262 = pneg %p52
        %s263 = smul.u32 16, %s13
        %p264 = scmp.eq.s32.totalorder %s13, 0
        // Predicated region
        $region63: #{tpu_custom_call.1} parent=57 // pred_check
          %p265 = pneg %p264
        $region64: #{tpu_custom_call.1} parent=57 // pred_check_branch
          %267 = sbr.rel (%p265) target = $region66
        $region65: #{tpu_custom_call.1} parent=57 // pred_region
          %vm268 = vcmask 25600
          %269 = vst.msk [vmem:[#allocation2] sm:$0x3] %vm268, 0.0
        $region66: #{tpu_custom_call.1} parent=57 // pred_fallthru
          _
        %v270 = vld [vmem:[#allocation2] sm:$0x3]
        %v271 = vld [vmem:[%s251] sm:$0xff]
        %v272 = vld [vmem:[%s251 + $0x8] sm:$0xff]
        %v273 = vld [vmem:[%s251 + $0x10] sm:$0xff]
        %v274 = vld [vmem:[%s251 + $0x18] sm:$0xff]
        %v275 = vld [vmem:[%s251 + $0x20] sm:$0xff]
        %v276 = vld [vmem:[%s251 + $0x28] sm:$0xff]
        %v277 = vld [vmem:[%s251 + $0x30] sm:$0xff]
        %v278 = vld [vmem:[%s251 + $0x38] sm:$0xff]
        %v279 = vld [vmem:[%s251 + $0x40] sm:$0xff]
        %v280 = vld [vmem:[%s251 + $0x48] sm:$0xff]
        %v281 = vld [vmem:[%s251 + $0x50] sm:$0xff]
        %v282 = vld [vmem:[%s251 + $0x58] sm:$0xff]
        %v283 = vld [vmem:[%s251 + $0x60] sm:$0xff]
        %v284 = vld [vmem:[%s251 + $0x68] sm:$0xff]
        %v285 = vld [vmem:[%s251 + $0x70] sm:$0xff]
        %v286 = vld [vmem:[%s251 + $0x78] sm:$0xff]
        %v287 = vld [vmem:[%s251 + $0x80] sm:$0xff]
        %v288 = vld [vmem:[%s251 + $0x88] sm:$0xff]
        %v289 = vld [vmem:[%s251 + $0x90] sm:$0xff]
        %v290 = vld [vmem:[%s251 + $0x98] sm:$0xff]
        %v291 = vld [vmem:[%s251 + $0xa0] sm:$0xff]
        %v292 = vld [vmem:[%s251 + $0xa8] sm:$0xff]
        %v293 = vld [vmem:[%s251 + $0xb0] sm:$0xff]
        %v294 = vld [vmem:[%s251 + $0xb8] sm:$0xff]
        %v295 = vld [vmem:[%s251 + $0xc0] sm:$0xff]
        %v296 = vld [vmem:[%s251 + $0xc8] sm:$0xff]
        %v297 = vld [vmem:[%s251 + $0xd0] sm:$0xff]
        %v298 = vld [vmem:[%s251 + $0xd8] sm:$0xff]
        %v299 = vld [vmem:[%s251 + $0xe0] sm:$0xff]
        %v300 = vld [vmem:[%s251 + $0xe8] sm:$0xff]
        %v301 = vld [vmem:[%s251 + $0xf0] sm:$0xff]
        %v302 = vld [vmem:[%s251 + $0xf8] sm:$0xff]
        %vm303 = vcmask 31744
        %v304 = vsel %vm303, %v271, 0.0
        %v305 = vsel %vm303, %v272, 0.0
        %v306 = vadd.f32 %v304, %v305
        %v307 = vsel %vm303, %v273, 0.0
        %v308 = vadd.f32 %v306, %v307
        %v309 = vsel %vm303, %v274, 0.0
        %v310 = vadd.f32 %v308, %v309
        %v311 = vsel %vm303, %v275, 0.0
        %v312 = vadd.f32 %v310, %v311
        %v313 = vsel %vm303, %v276, 0.0
        %v314 = vadd.f32 %v312, %v313
        %v315 = vsel %vm303, %v277, 0.0
        %v316 = vadd.f32 %v314, %v315
        %v317 = vsel %vm303, %v278, 0.0
        %v318 = vadd.f32 %v316, %v317
        %v319 = vsel %vm303, %v279, 0.0
        %v320 = vadd.f32 %v318, %v319
        %v321 = vsel %vm303, %v280, 0.0
        %v322 = vadd.f32 %v320, %v321
        %v323 = vsel %vm303, %v281, 0.0
        %v324 = vadd.f32 %v322, %v323
        %v325 = vsel %vm303, %v282, 0.0
        %v326 = vadd.f32 %v324, %v325
        %v327 = vsel %vm303, %v283, 0.0
        %v328 = vadd.f32 %v326, %v327
        %v329 = vsel %vm303, %v284, 0.0
        %v330 = vadd.f32 %v328, %v329
        %v331 = vsel %vm303, %v285, 0.0
        %v332 = vadd.f32 %v330, %v331
        %v333 = vsel %vm303, %v286, 0.0
        %v334 = vadd.f32 %v332, %v333
        %v335 = vrot.slane %v334, 4
        %v336 = vadd.f32 %v334, %v335
        %v337 = vrot.slane %v336, 2
        %v338 = vadd.f32 %v336, %v337
        %v339 = vrot.slane %v338, 1
        %v340 = vadd.f32 %v338, %v339
        %v341 = vsel %vm303, %v287, 0.0
        %v342 = vsel %vm303, %v288, 0.0
        %v343 = vadd.f32 %v341, %v342
        %v344 = vsel %vm303, %v289, 0.0
        %v345 = vadd.f32 %v343, %v344
        %v346 = vsel %vm303, %v290, 0.0
        %v347 = vadd.f32 %v345, %v346
        %v348 = vsel %vm303, %v291, 0.0
        %v349 = vadd.f32 %v347, %v348
        %v350 = vsel %vm303, %v292, 0.0
        %v351 = vadd.f32 %v349, %v350
        %v352 = vsel %vm303, %v293, 0.0
        %v353 = vadd.f32 %v351, %v352
        %v354 = vsel %vm303, %v294, 0.0
        %v355 = vadd.f32 %v353, %v354
        %v356 = vsel %vm303, %v295, 0.0
        %v357 = vadd.f32 %v355, %v356
        %v358 = vsel %vm303, %v296, 0.0
        %v359 = vadd.f32 %v357, %v358
        %v360 = vsel %vm303, %v297, 0.0
        %v361 = vadd.f32 %v359, %v360
        %v362 = vsel %vm303, %v298, 0.0
        %v363 = vadd.f32 %v361, %v362
        %v364 = vsel %vm303, %v299, 0.0
        %v365 = vadd.f32 %v363, %v364
        %v366 = vsel %vm303, %v300, 0.0
        %v367 = vadd.f32 %v365, %v366
        %v368 = vsel %vm303, %v301, 0.0
        %v369 = vadd.f32 %v367, %v368
        %v370 = vsel %vm303, %v302, 0.0
        %v371 = vadd.f32 %v369, %v370
        %v372 = vrot.slane %v371, 4
        %v373 = vadd.f32 %v371, %v372
        %v374 = vrot.slane %v373, 2
        %v375 = vadd.f32 %v373, %v374
        %v376 = vrot.slane %v375, 1
        %v377 = vadd.f32 %v375, %v376
        %vm380 = vcmask 1041409
        %v381 = vsel %vm380, %v377, %v340
        %v383 = vadd.f32 %v270, %v381
        %vm384 = vcmask 25600
        %385 = vst.msk [vmem:[#allocation2] sm:$0x3] %vm384, %v383
        %p386 = scmp.eq.s32.totalorder %s13, 1
        // Predicated region
        $region67: #{tpu_custom_call.1} parent=57 // pred_check
          %p387 = pneg %p386
        $region68: #{tpu_custom_call.1} parent=57 // pred_check_branch
          %389 = sbr.rel (%p387) target = $region70
        $region69: #{tpu_custom_call.1} parent=57 // pred_region
          %v390 = vld [vmem:[#allocation2] sm:$0x3]
          %v391 = vmul.f32 %v390, 0.00390625
          %392 = vst.msk [vmem:[#allocation4] sm:$0x3] %vm384, %v391
        $region70: #{tpu_custom_call.1} parent=57 // pred_fallthru
          _
        // Predicated region
        $region71: #{tpu_custom_call.1} parent=57 // pred_check
          %p393 = pneg %p52
        $region72: #{tpu_custom_call.1} parent=57 // pred_check_branch
          %395 = sbr.rel (%p393) target = $region74
        $region73: #{tpu_custom_call.1} parent=57 // pred_region
          %397 = vsyncadd [#allocation5], 0
          %s399 = sshll.u32 [#allocation4], 4
          %s400 = int_to_ptr.vmem [resolvable:$true] %s399
          %s401 = sshll.u32 %s1, 4
          %s402 = int_to_ptr.hbm [resolvable:$true] %s401
          %404 = dma.vmem_to_hbm [thread:$0]  %s400, 32, %s402, [#allocation5]
        $region74: #{tpu_custom_call.1} parent=57 // pred_fallthru
          _
        // Predicated region
        $region75: #{tpu_custom_call.1} parent=57 // pred_check
          %p405 = pneg %p52
        $region76: #{tpu_custom_call.1} parent=57 // pred_check_branch
          %407 = sbr.rel (%p405) target = $region78
        $region77: #{tpu_custom_call.1} parent=57 // pred_region
          %409 = dma.done [#allocation5], 32
        $region78: #{tpu_custom_call.1} parent=57 // pred_fallthru
          _
      $region58: #{tpu_custom_call.1} parent=5 // pred_fallthru
        _
      %p410 = scmp.le.s32.totalorder 2, %s8
      // Predicated region
      $region79: #{tpu_custom_call.1} parent=5 // pred_check
        %p411 = pneg %p410
      $region80: #{tpu_custom_call.1} parent=5 // pred_check_branch
        %413 = sbr.rel (%p411) target = $region82
      $region81: #{tpu_custom_call.1} parent=5 // pred_region
        %s414 = ssub.s32 %s8, 2
      $region82: #{tpu_custom_call.1} parent=5 // pred_fallthru
        _
    $region6: #{tpu_custom_call.1} parent=1 // loop_footer
      %s12 = sadd.s32 1, %s8
    $region7: #{tpu_custom_call.1} parent=1 // loop_footer_branch
      %7 = sbr.rel target = $region3
    $region8: #{tpu_custom_call.1} parent=1 // loop_exit
      _
    %415 = vsyncpa [#allocation5], 1
    %s416 = scalar_lea.sflag [#allocation5], 1
    %417 = vsyncpa %s416, 1

</llo_original>
